<compile_context>
chip_gen: v7x
topology: tpu7x:2x2x1
jax: 0.10.0
libtpu: 0.0.40
codegen_flags: <defaults>
</compile_context>

<pallas_src>
import jax
import jax.numpy as jnp
from jax.experimental import pallas as pl
from jax.experimental.pallas import tpu as pltpu


def _drop_path_kernel(scale_ref, x_ref, o_ref):
    # scale_ref: (TB, 1, 1) float32 — per-sample mask / keep_prob.
    # x_ref / o_ref: (TB, TR, 128) activation tile.
    # bf16 * f32 promotes to f32; single cast back to the output dtype.
    o_ref[...] = (x_ref[...] * scale_ref[...]).astype(o_ref.dtype)


def drop_path_pallas(x, drop_prob: float, training: bool, rng_key,
                     tile_bytes: int = 4 * 1024 * 1024):
    """DropPath forward. x is NCHW (or any (B, ...) tensor)."""
    if drop_prob == 0.0 or not training:
        return x

    keep_prob = 1.0 - drop_prob
    B = x.shape[0]
    F = 1
    for d in x.shape[1:]:
        F *= d

    # Per-sample bernoulli(keep_prob) mask folded with 1/keep_prob, in float32.
    u = jax.random.uniform(rng_key, (B,), dtype=jnp.float32)
    scale = (u < keep_prob).astype(jnp.float32) * (1.0 / keep_prob)   # (B,)
    scale3 = scale.reshape(B, 1, 1)

    lanes = 128
    itemsize = jnp.dtype(x.dtype).itemsize
    sub = 8 * max(1, 4 // itemsize)     # sublane multiple: 8 f32 / 16 bf16 / 32 int8

    # Rows of 128 lanes per sample.  Only lane padding (F -> R*128); the row
    # dimension stays ragged and Pallas masks the partial final tile.
    R = pl.cdiv(F, lanes)
    F_lane = R * lanes

    # VMEM-layout-padded footprint of one sample's (R, 128) slab, plus the
    # (1,1) scale slab (pads to one (8,128) f32 tile).
    sample_bytes_padded = pl.cdiv(R, sub) * sub * lanes * itemsize
    scale_slab_bytes = 8 * lanes * 4

    if sample_bytes_padded >= tile_bytes // 2:
        # Large per-sample footprint: one sample per step, tile the rows.
        TB = 1
        tr_target = max(sub, (tile_bytes // (lanes * itemsize)) // sub * sub)
        TR = R if R <= tr_target else tr_target
    else:
        # Small per-sample footprint: whole sample per block, TB samples/step.
        TR = R
        TB = max(1, min(B, tile_bytes // (sample_bytes_padded + scale_slab_bytes)))

    grid = (pl.cdiv(B, TB), pl.cdiv(R, TR))

    x_flat = x.reshape(B, F)
    if F_lane != F:
        x_flat = jnp.pad(x_flat, ((0, 0), (0, F_lane - F)))
    x3 = x_flat.reshape(B, R, lanes)

    out3 = pl.pallas_call(
        _drop_path_kernel,
        out_shape=jax.ShapeDtypeStruct((B, R, lanes), x.dtype),
        grid=grid,
        in_specs=[
            pl.BlockSpec((TB, 1, 1), lambda b, r: (b, 0, 0)),       # per-sample scale
            pl.BlockSpec((TB, TR, lanes), lambda b, r: (b, r, 0)),  # activation tile
        ],
        out_specs=pl.BlockSpec((TB, TR, lanes), lambda b, r: (b, r, 0)),
        input_output_aliases={1: 0},     # reuse x's HBM buffer when donated
        compiler_params=pltpu.CompilerParams(
            dimension_semantics=("parallel", "parallel"),
            vmem_limit_bytes=32 * 1024 * 1024,
        ),
    )(scale3, x3)

    out_flat = out3.reshape(B, F_lane)
    if F_lane != F:
        out_flat = out_flat[:, :F]
    return out_flat.reshape(x.shape)


class DropPath:
    """JAX/Pallas mirror of the PyTorch DropPath module."""

    def __init__(self, drop_prob=None):
        self.drop_prob = drop_prob if drop_prob is not None else 0.0
        self.training = True

    def __call__(self, x, rng_key):
        return drop_path_pallas(x, self.drop_prob, self.training, rng_key)


def _ref_drop_path(x, drop_prob, rng_key):
    """Pure-JAX reference with identical math / RNG stream."""
    keep_prob = 1.0 - drop_prob
    B = x.shape[0]
    u = jax.random.uniform(rng_key, (B,), dtype=jnp.float32)
    s = (u < keep_prob).astype(jnp.float32) * (1.0 / keep_prob)
    s = s.reshape((B,) + (1,) * (x.ndim - 1))
    return (x.astype(jnp.float32) * s).astype(x.dtype)


if __name__ == "__main__":
    key = jax.random.PRNGKey(0)
    kx, kmask = jax.random.split(key)

    drop_prob = 0.25
    module = DropPath(drop_prob)
    module.training = True

    # --- main case: NCHW f32, F % 128 == 0 (no padding path) ---
    B, C, H, W = 2, 4, 16, 16
    x = jax.random.normal(kx, (B, C, H, W), dtype=jnp.float32)
    ref = _ref_drop_path(x, drop_prob, kmask)
    out = jax.block_until_ready(module(x, kmask))
    assert out.shape == x.shape and out.dtype == x.dtype
    assert jnp.allclose(out, ref, atol=1e-6), "mismatch vs reference (f32)"

    # --- ragged feature size + bf16 (exercises lane pad + f32-scale math) ---
    x2 = jax.random.normal(jax.random.fold_in(kx, 1), (2, 3, 5, 7),
                           dtype=jnp.bfloat16)
    ref2 = _ref_drop_path(x2, drop_prob, kmask)
    out2 = jax.block_until_ready(module(x2, kmask))
    assert out2.shape == x2.shape and out2.dtype == x2.dtype
    assert jnp.allclose(out2.astype(jnp.float32), ref2.astype(jnp.float32),
                        atol=1e-2, rtol=1e-2), "mismatch vs reference (bf16)"

    # --- row-tiled path with a ragged final row tile (forced via tiny budget) ---
    x3 = jax.random.normal(jax.random.fold_in(kx, 2), (2, 3, 40, 128),
                           dtype=jnp.float32)           # R = 120, TR = 64
    ref3 = _ref_drop_path(x3, drop_prob, kmask)
    out3 = jax.block_until_ready(
        drop_path_pallas(x3, drop_prob, True, kmask, tile_bytes=32 * 1024))
    assert jnp.allclose(out3, ref3, atol=1e-6), "mismatch vs reference (row-tiled)"

    # --- multi-sample blocks with a ragged batch tile (B=3, TB=2) ---
    x4 = jax.random.normal(jax.random.fold_in(kx, 3), (3, 4, 16, 16),
                           dtype=jnp.float32)
    ref4 = _ref_drop_path(x4, drop_prob, kmask)
    out4 = jax.block_until_ready(
        drop_path_pallas(x4, drop_prob, True, kmask, tile_bytes=16 * 1024))
    assert jnp.allclose(out4, ref4, atol=1e-6), "mismatch vs reference (batched)"

    # --- eval mode / drop_prob == 0 is identity, as in PyTorch ---
    module.training = False
    out_eval = jax.block_until_ready(module(x, kmask))
    assert jnp.array_equal(out_eval, x)

    print("KERNEL_OK")
</pallas_src>

<mosaic_0001>
module attributes {stable_mosaic.version = 11 : i64} {
  func.func @_drop_path_kernel(%arg0: i32, %arg1: i32, %arg2: memref<2x1x1xf32, #tpu.memory_space<vmem>>, %arg3: memref<2x8x128xf32, #tpu.memory_space<vmem>>, %arg4: memref<2x8x128xf32, #tpu.memory_space<vmem>>) attributes {dimension_semantics = [#tpu.dimension_semantics<parallel>, #tpu.dimension_semantics<parallel>], iteration_bounds = array<i64: 1, 1>, scalar_prefetch = 0 : i64, scratch_operands = 0 : i64, tpu.core_type = #tpu.core_type<tc>, window_params = [{transform_indices = @transform_0, window_bounds = array<i64: 2, 1, 1>}, {transform_indices = @transform_1, window_bounds = array<i64: 2, 8, 128>}, {transform_indices = @transform_2, window_bounds = array<i64: 2, 8, 128>}]} {
    %c0 = arith.constant 0 : index
    %c0_0 = arith.constant 0 : index
    %c0_1 = arith.constant 0 : index
    %0 = vector.load %arg3[%c0, %c0_0, %c0_1] : memref<2x8x128xf32, #tpu.memory_space<vmem>>, vector<2x8x128xf32>
    %c0_2 = arith.constant 0 : index
    %c0_3 = arith.constant 0 : index
    %c0_4 = arith.constant 0 : index
    %1 = vector.load %arg2[%c0_2, %c0_3, %c0_4] : memref<2x1x1xf32, #tpu.memory_space<vmem>>, vector<2x1x1xf32>
    %2 = vector.broadcast %1 : vector<2x1x1xf32> to vector<2x8x128xf32>
    %3 = arith.mulf %0, %2 : vector<2x8x128xf32>
    %c0_5 = arith.constant 0 : index
    %c0_6 = arith.constant 0 : index
    %c0_7 = arith.constant 0 : index
    %4 = vector.load %arg4[%c0_5, %c0_6, %c0_7] : memref<2x8x128xf32, #tpu.memory_space<vmem>>, vector<2x8x128xf32>
    tpu.vector_store %arg4[%c0_5, %c0_6, %c0_7], %3 {strides = array<i32>} : memref<2x8x128xf32, #tpu.memory_space<vmem>>, vector<2x8x128xf32>,
    return
  }
  func.func @transform_0(%arg0: i32, %arg1: i32) -> (i32, i32, i32) {
    %c0_i32 = arith.constant 0 : i32
    %c0_i32_0 = arith.constant 0 : i32
    %c0_i32_1 = arith.constant 0 : i32
    return %arg0, %c0_i32, %c0_i32_0 : i32, i32, i32
  }
  func.func @transform_1(%arg0: i32, %arg1: i32) -> (i32, i32, i32) {
    %c0_i32 = arith.constant 0 : i32
    %c0_i32_0 = arith.constant 0 : i32
    return %arg0, %arg1, %c0_i32 : i32, i32, i32
  }
  func.func @transform_2(%arg0: i32, %arg1: i32) -> (i32, i32, i32) {
    %c0_i32 = arith.constant 0 : i32
    %c0_i32_0 = arith.constant 0 : i32
    return %arg0, %arg1, %c0_i32 : i32, i32, i32
  }
}

</mosaic_0001>

<llo_original>
// kernel: tpu_custom_call.1
$region0: #{tpu_custom_call.1}
  #allocation0 [shape = 'u32[]', space=smem, size = 0x4, offset = 0x4, fixed_abs, tag = 'smem constant byte address 0x4 - core index']
  #allocation1 [shape = 'u32[144,128]{1,0:T(1,128)}', space=vmem, size = 0x12000, scoped, tag = 'internal scratch']
  %s0 = inlined_call_operand.vmem [shape: f32[2,1,1], index: 0, kind: input, shape index: {}]
  %s1 = inlined_call_operand.hbm [shape: f32[2,8,128], index: 1, kind: input, shape index: {}, may-alias: {1,2}]
  %s2 = inlined_call_operand.hbm [shape: f32[2,8,128], index: 2, kind: output, shape index: {}, may-alias: {1,2}]
  %s3 = sld [smem:[#allocation0]]
  $region22: #{tpu_custom_call.1} parent=0
    _
  %s5 = ssub.s32 1, %s3
  %s6 = scalar_select 0, %s5, %s3
  $region1: #{tpu_custom_call.1} parent=0
    #allocation2 [shape = 'u8[8192]{0}', space=vmem, size = 0x2000, scoped, tag = 'input window, operand 1, single buffered']
    #allocation3 [shape = 's32[1]{0}', space=sflag, size = 0x4, scoped, tag = 'scoped memory for tpu_custom_call.1']
    #allocation4 [shape = 's32[1]{0}', space=sflag, size = 0x4, scoped, tag = 'scoped memory for tpu_custom_call.1']
    #allocation5 [shape = 'u8[8192]{0}', space=vmem, size = 0x2000, scoped, tag = 'output window, operand 0, single buffered']
    %7 = vsyncpa [#allocation3], 0
    %8 = vsyncpa [#allocation4], 0
    // Predicated region
    $region2: #{tpu_custom_call.1} parent=1 // pred_check
      _
    $region3: #{tpu_custom_call.1} parent=1 // pred_check_branch
      %10 = sbr.rel (0) target = $region5
    $region4: #{tpu_custom_call.1} parent=1 // pred_region
      _
    $region5: #{tpu_custom_call.1} parent=1 // pred_fallthru
      _
    // Predicated region
    $region6: #{tpu_custom_call.1} parent=1 // pred_check
      _
    $region7: #{tpu_custom_call.1} parent=1 // pred_check_branch
      %12 = sbr.rel (0) target = $region9
    $region8: #{tpu_custom_call.1} parent=1 // pred_region
      %s14 = ssub.s32 256, 256
      %15 = vsyncadd [#allocation3], %s14
      %s16 = sshll.u32 [#allocation2], 4
      %s17 = int_to_ptr.vmem [resolvable:$true] %s16
      %22 = dma.hbm_to_vmem [thread:$0]  %s1, 256, %s17, [#allocation3], 128, 128, 8
    $region9: #{tpu_custom_call.1} parent=1 // pred_fallthru
      _
    // Predicated region
    $region10: #{tpu_custom_call.1} parent=1 // pred_check
      _
    $region11: #{tpu_custom_call.1} parent=1 // pred_check_branch
      %24 = sbr.rel (0) target = $region13
    $region12: #{tpu_custom_call.1} parent=1 // pred_region
      %25 = dma.done [#allocation3], 256
    $region13: #{tpu_custom_call.1} parent=1 // pred_fallthru
      _
    %v26 = vld [vmem:[#allocation2] sm:$0xff]
    %v27 = vld [vmem:[#allocation2 + $0x8] sm:$0xff]
    %v28 = vld [vmem:[%s0] sm:$0x1]
    %v29 = vld [vmem:[%s0 + $0x1] sm:$0x1]
    %v32 = vlaneseq
    %v33 = vshrl.u32 %v32, 7
    %v34 = vsub.s32 0, %v33
    %v35 = vrot.slane %v28, %v34
    %v36 = vlaneseq
    %v37 = vshrl.u32 %v36, 7
    %v38 = vsub.s32 0, %v37
    %v39 = vrot.slane %v29, %v38
    %40 = vset.pattern.permute.xlu0 0
    %41 = vperm.xlu0 %40, %v35
    %v42 = vpop.permute.xlu0 %41
    %44 = vset.pattern.permute.xlu0 0
    %45 = vperm.xlu0 %44, %v39
    %v46 = vpop.permute.xlu0 %45
    %v48 = vmul.f32 %v26, %v42
    %v49 = vmul.f32 %v27, %v46
    %50 = vst [vmem:[#allocation5] sm:$0xff] %v48
    %51 = vst [vmem:[#allocation5 + $0x8] sm:$0xff] %v49
    // Predicated region
    $region14: #{tpu_custom_call.1} parent=1 // pred_check
      _
    $region15: #{tpu_custom_call.1} parent=1 // pred_check_branch
      %53 = sbr.rel (0) target = $region17
    $region16: #{tpu_custom_call.1} parent=1 // pred_region
      %s55 = ssub.s32 256, 256
      %56 = vsyncadd [#allocation4], %s55
      %s57 = sshll.u32 [#allocation5], 4
      %s58 = int_to_ptr.vmem [resolvable:$true] %s57
      %63 = dma.vmem_to_hbm [thread:$0]  %s58, 256, %s2, [#allocation4], 128, 128, 8
    $region17: #{tpu_custom_call.1} parent=1 // pred_fallthru
      _
    // Predicated region
    $region18: #{tpu_custom_call.1} parent=1 // pred_check
      _
    $region19: #{tpu_custom_call.1} parent=1 // pred_check_branch
      %65 = sbr.rel (0) target = $region21
    $region20: #{tpu_custom_call.1} parent=1 // pred_region
      %66 = dma.done [#allocation4], 256
    $region21: #{tpu_custom_call.1} parent=1 // pred_fallthru
      _
    %67 = vsyncpa [#allocation3], 1
    %68 = vsyncpa [#allocation4], 1

</llo_original>
